<compile_context>
chip_gen: v6e
topology: v6e:2x2x1
jax: 0.10.0
libtpu: 0.0.40
codegen_flags: <defaults>
</compile_context>

<pallas_src>
import jax
import jax.numpy as jnp
from jax.experimental import pallas as pl
from jax.experimental.pallas import tpu as pltpu


def _round_up(a, m):
    return (a + m - 1) // m * m


# ----------------------------------------------------------------------------
# Kernel: one (TB, F_in_p) slab of batch rows -> all four layers fused in VMEM.
# ----------------------------------------------------------------------------
def autoencoder_kernel(x_ref, w1_ref, b1_ref, w2_ref, b2_ref,
                       w3_ref, b3_ref, w4_ref, b4_ref,
                       out_ref, lat_ref):
    mdt = w1_ref.dtype  # matmul operand dtype (bf16 or f32); accumulation is f32.

    x = x_ref[...]                                                     # (TB, F_in_p)

    h1 = jnp.maximum(
        jnp.dot(x, w1_ref[...], preferred_element_type=jnp.float32)
        + b1_ref[...], 0.0)                                            # (TB, F_h_p) f32

    lat = jnp.maximum(
        jnp.dot(h1.astype(mdt), w2_ref[...], preferred_element_type=jnp.float32)
        + b2_ref[...], 0.0)                                            # (TB, F_lat_p) f32

    h3 = jnp.maximum(
        jnp.dot(lat.astype(mdt), w3_ref[...], preferred_element_type=jnp.float32)
        + b3_ref[...], 0.0)                                            # (TB, F_h_p) f32

    out = jnp.maximum(
        jnp.dot(h3.astype(mdt), w4_ref[...], preferred_element_type=jnp.float32)
        + b4_ref[...], 0.0)                                            # (TB, F_in_p) f32

    out_ref[...] = out.astype(out_ref.dtype)
    lat_ref[...] = lat.astype(lat_ref.dtype)


# ----------------------------------------------------------------------------
# One-time parameter preparation (hoisted out of the per-call forward path):
# transpose to (in, out), zero-pad all feature dims to multiples of 128,
# cast matmul operands to matmul_dtype, keep biases in f32.
# ----------------------------------------------------------------------------
def prepare_params(params, *, matmul_dtype=jnp.bfloat16):
    F_h, F_in = params["W1"].shape          # nn.Linear weight is (out, in)
    F_lat = params["W2"].shape[0]

    F_in_p = _round_up(F_in, 128)
    F_h_p = _round_up(F_h, 128)
    F_lat_p = _round_up(F_lat, 128)

    def pad_w(w_t, rows, cols):             # w_t already transposed to (in, out)
        return jnp.zeros((rows, cols), matmul_dtype).at[
            :w_t.shape[0], :w_t.shape[1]].set(w_t.astype(matmul_dtype))

    def pad_b(b, cols):
        return jnp.zeros((1, cols), jnp.float32).at[
            0, :b.shape[0]].set(b.astype(jnp.float32))

    prepped = {
        "w1": pad_w(params["W1"].T, F_in_p, F_h_p),
        "b1": pad_b(params["b1"], F_h_p),
        "w2": pad_w(params["W2"].T, F_h_p, F_lat_p),
        "b2": pad_b(params["b2"], F_lat_p),
        "w3": pad_w(params["W3"].T, F_lat_p, F_h_p),
        "b3": pad_b(params["b3"], F_h_p),
        "w4": pad_w(params["W4"].T, F_h_p, F_in_p),
        "b4": pad_b(params["b4"], F_in_p),
        "dims": (F_in, F_h, F_lat, F_in_p, F_h_p, F_lat_p),
        "matmul_dtype": matmul_dtype,
    }
    return prepped


# ----------------------------------------------------------------------------
# Forward wrapper.
# ----------------------------------------------------------------------------
def topo_autoencoder_forward(x, prepped, *, block_b=256):
    """x: (B, F_in). Returns (out (B, F_in), latent (B, F_lat)) like the module."""
    B, F_in_x = x.shape
    F_in, F_h, F_lat, F_in_p, F_h_p, F_lat_p = prepped["dims"]
    assert F_in_x == F_in, (F_in_x, F_in)
    mdt = prepped["matmul_dtype"]

    # Batch tile: sublane-aligned, collapsed to one grid step for small B,
    # capped for vreg pressure (f32 intermediates live across 4 layers).
    max_tb = 512 if jnp.dtype(mdt).itemsize == 2 else 256
    B8 = _round_up(B, 8)
    TB = _round_up(min(block_b, max_tb, B8), 8)
    Bp = _round_up(B8, TB)

    # Pad input batch rows and feature columns with zeros (zero rows/cols are
    # harmless: rows are independent, padded weight rows are zero).
    x_p = jnp.zeros((Bp, F_in_p), mdt).at[:B, :F_in].set(x.astype(mdt))

    grid = (Bp // TB,)
    const = lambda shape: pl.BlockSpec(shape, lambda b: (0, 0))

    # VMEM budget: double-buffered pipeline over weights + per-step slabs.
    itm = jnp.dtype(mdt).itemsize
    w_bytes = itm * (F_in_p * F_h_p + F_h_p * F_lat_p + F_lat_p * F_h_p + F_h_p * F_in_p)
    b_bytes = 4 * (2 * F_h_p + F_lat_p + F_in_p)
    slab_bytes = TB * (F_in_p * itm + F_in_p * 4 + F_lat_p * 4)
    needed = 2 * (w_bytes + b_bytes + slab_bytes) + (8 << 20)
    vmem_limit = int(min(110 << 20, max(32 << 20, needed)))

    out, lat = pl.pallas_call(
        autoencoder_kernel,
        out_shape=(
            jax.ShapeDtypeStruct((Bp, F_in_p), jnp.float32),
            jax.ShapeDtypeStruct((Bp, F_lat_p), jnp.float32),
        ),
        grid=grid,
        in_specs=[
            pl.BlockSpec((TB, F_in_p), lambda b: (b, 0)),     # x slab
            const((F_in_p, F_h_p)),                           # W1^T (padded)
            const((1, F_h_p)),                                # b1
            const((F_h_p, F_lat_p)),                          # W2^T
            const((1, F_lat_p)),                              # b2
            const((F_lat_p, F_h_p)),                          # W3^T
            const((1, F_h_p)),                                # b3
            const((F_h_p, F_in_p)),                           # W4^T
            const((1, F_in_p)),                               # b4
        ],
        out_specs=(
            pl.BlockSpec((TB, F_in_p), lambda b: (b, 0)),     # reconstruction
            pl.BlockSpec((TB, F_lat_p), lambda b: (b, 0)),    # latent (lane-dense)
        ),
        compiler_params=pltpu.CompilerParams(
            dimension_semantics=("parallel",),                # megacore split on v7x
            vmem_limit_bytes=vmem_limit,
        ),
    )(x_p, prepped["w1"], prepped["b1"], prepped["w2"], prepped["b2"],
      prepped["w3"], prepped["b3"], prepped["w4"], prepped["b4"])

    return out[:B, :F_in], lat[:B, :F_lat]


# ----------------------------------------------------------------------------
# Pure-JAX reference mirroring the PyTorch forward (f32, highest precision).
# ----------------------------------------------------------------------------
def topo_autoencoder_reference(x, params):
    hp = jax.lax.Precision.HIGHEST
    xr = x.astype(jnp.float32)
    h1 = jax.nn.relu(jnp.dot(xr, params["W1"].T, precision=hp) + params["b1"])
    lat = jax.nn.relu(jnp.dot(h1, params["W2"].T, precision=hp) + params["b2"])
    h3 = jax.nn.relu(jnp.dot(lat, params["W3"].T, precision=hp) + params["b3"])
    out = jax.nn.relu(jnp.dot(h3, params["W4"].T, precision=hp) + params["b4"])
    return out, lat


def make_params(key, n_simplices, input_dims, latent_space_size):
    """Deterministic synthetic parameters (nn.Linear layout: (out, in))."""
    inter = (input_dims + latent_space_size) // 2
    f_in = n_simplices * input_dims
    f_h = n_simplices * inter
    f_lat = n_simplices * latent_space_size
    ks = jax.random.split(key, 8)

    def lin(kw, kb, fan_in, fan_out):
        s = 1.0 / jnp.sqrt(jnp.float32(fan_in))
        return (s * jax.random.normal(kw, (fan_out, fan_in), jnp.float32),
                s * jax.random.normal(kb, (fan_out,), jnp.float32))

    W1, b1 = lin(ks[0], ks[1], f_in, f_h)     # lin_1
    W2, b2 = lin(ks[2], ks[3], f_h, f_lat)    # lin_2
    W3, b3 = lin(ks[4], ks[5], f_lat, f_h)    # lin_3
    W4, b4 = lin(ks[6], ks[7], f_h, f_in)     # lin_4
    return {"W1": W1, "b1": b1, "W2": W2, "b2": b2,
            "W3": W3, "b3": b3, "W4": W4, "b4": b4}


if __name__ == "__main__":
    key = jax.random.PRNGKey(0)
    kx, kp = jax.random.split(key)

    # input_shape = (n_simplices=8, input_dims=16), latent_space_size = 8
    #  -> F_in = 128, F_h = 96 (padded to 128), F_lat = 64 (padded to 128)
    n_simplices, input_dims, latent_space_size = 8, 16, 8
    B = 128
    F_in = n_simplices * input_dims

    x = jax.random.normal(kx, (B, F_in), jnp.float32)
    params = make_params(kp, n_simplices, input_dims, latent_space_size)
    ref_out, ref_lat = topo_autoencoder_reference(x, params)

    # --- f32 operands: exact-semantics path (tight tolerance vs reference) ---
    prepped_f32 = prepare_params(params, matmul_dtype=jnp.float32)   # hoisted prep
    out32, lat32 = topo_autoencoder_forward(x, prepped_f32, block_b=256)  # grid=(1,), TB=128
    out32 = jax.block_until_ready(out32)
    lat32 = jax.block_until_ready(lat32)
    assert out32.shape == ref_out.shape and lat32.shape == ref_lat.shape
    assert jnp.allclose(out32, ref_out, atol=5e-4, rtol=5e-4), "f32 recon mismatch"
    assert jnp.allclose(lat32, ref_lat, atol=5e-4, rtol=5e-4), "f32 latent mismatch"

    # --- bf16 operands (default fast path): f32 accumulation, looser tolerance ---
    prepped_bf16 = prepare_params(params)                             # bf16 by default
    out16, lat16 = topo_autoencoder_forward(x, prepped_bf16, block_b=256)
    out16 = jax.block_until_ready(out16)
    lat16 = jax.block_until_ready(lat16)
    assert out16.shape == ref_out.shape and lat16.shape == ref_lat.shape
    assert jnp.allclose(out16, ref_out, atol=5e-2, rtol=5e-2), "bf16 recon mismatch"
    assert jnp.allclose(lat16, ref_lat, atol=5e-2, rtol=5e-2), "bf16 latent mismatch"

    print("KERNEL_OK")
</pallas_src>

<mosaic_0001>
module attributes {stable_mosaic.version = 11 : i64} {
  func.func @autoencoder_kernel(%arg0: i32, %arg1: memref<128x128xf32, #tpu.memory_space<vmem>>, %arg2: memref<128x128xf32, #tpu.memory_space<vmem>>, %arg3: memref<1x128xf32, #tpu.memory_space<vmem>>, %arg4: memref<128x128xf32, #tpu.memory_space<vmem>>, %arg5: memref<1x128xf32, #tpu.memory_space<vmem>>, %arg6: memref<128x128xf32, #tpu.memory_space<vmem>>, %arg7: memref<1x128xf32, #tpu.memory_space<vmem>>, %arg8: memref<128x128xf32, #tpu.memory_space<vmem>>, %arg9: memref<1x128xf32, #tpu.memory_space<vmem>>, %arg10: memref<128x128xf32, #tpu.memory_space<vmem>>, %arg11: memref<128x128xf32, #tpu.memory_space<vmem>>) attributes {dimension_semantics = [#tpu.dimension_semantics<parallel>], iteration_bounds = array<i64: 1>, scalar_prefetch = 0 : i64, scratch_operands = 0 : i64, tpu.core_type = #tpu.core_type<tc>, window_params = [{transform_indices = @transform_0, window_bounds = array<i64: 128, 128>}, {pipeline_mode = #tpu.pipeline_mode<synchronous>, transform_indices = @transform_1, window_bounds = array<i64: 128, 128>}, {pipeline_mode = #tpu.pipeline_mode<synchronous>, transform_indices = @transform_2, window_bounds = array<i64: 1, 128>}, {pipeline_mode = #tpu.pipeline_mode<synchronous>, transform_indices = @transform_3, window_bounds = array<i64: 128, 128>}, {pipeline_mode = #tpu.pipeline_mode<synchronous>, transform_indices = @transform_4, window_bounds = array<i64: 1, 128>}, {pipeline_mode = #tpu.pipeline_mode<synchronous>, transform_indices = @transform_5, window_bounds = array<i64: 128, 128>}, {pipeline_mode = #tpu.pipeline_mode<synchronous>, transform_indices = @transform_6, window_bounds = array<i64: 1, 128>}, {pipeline_mode = #tpu.pipeline_mode<synchronous>, transform_indices = @transform_7, window_bounds = array<i64: 128, 128>}, {pipeline_mode = #tpu.pipeline_mode<synchronous>, transform_indices = @transform_8, window_bounds = array<i64: 1, 128>}, {transform_indices = @transform_9, window_bounds = array<i64: 128, 128>}, {transform_indices = @transform_10, window_bounds = array<i64: 128, 128>}]} {
    %c0 = arith.constant 0 : index
    %c0_0 = arith.constant 0 : index
    %0 = vector.load %arg1[%c0, %c0_0] : memref<128x128xf32, #tpu.memory_space<vmem>>, vector<128x128xf32>
    %c0_1 = arith.constant 0 : index
    %c0_2 = arith.constant 0 : index
    %1 = vector.load %arg2[%c0_1, %c0_2] : memref<128x128xf32, #tpu.memory_space<vmem>>, vector<128x128xf32>
    %cst = arith.constant dense<0.000000e+00> : vector<128x128xf32>
    %2 = tpu.matmul %0, %1, %cst {dimension_numbers = #tpu.dot_dimension_numbers<[1], [0], [0], [1], [0, 0, 1, 1], [], []>} : vector<128x128xf32>, vector<128x128xf32>, vector<128x128xf32> -> vector<128x128xf32>
    %c0_3 = arith.constant 0 : index
    %c0_4 = arith.constant 0 : index
    %3 = vector.load %arg3[%c0_3, %c0_4] : memref<1x128xf32, #tpu.memory_space<vmem>>, vector<1x128xf32>
    %4 = vector.broadcast %3 : vector<1x128xf32> to vector<128x128xf32>
    %5 = arith.addf %2, %4 : vector<128x128xf32>
    %cst_5 = arith.constant 0.000000e+00 : f32
    %6 = vector.broadcast %cst_5 : f32 to vector<128x128xf32>
    %7 = arith.maximumf %5, %6 : vector<128x128xf32>
    %c0_6 = arith.constant 0 : index
    %c0_7 = arith.constant 0 : index
    %8 = vector.load %arg4[%c0_6, %c0_7] : memref<128x128xf32, #tpu.memory_space<vmem>>, vector<128x128xf32>
    %cst_8 = arith.constant dense<0.000000e+00> : vector<128x128xf32>
    %9 = tpu.matmul %7, %8, %cst_8 {dimension_numbers = #tpu.dot_dimension_numbers<[1], [0], [0], [1], [0, 0, 1, 1], [], []>} : vector<128x128xf32>, vector<128x128xf32>, vector<128x128xf32> -> vector<128x128xf32>
    %c0_9 = arith.constant 0 : index
    %c0_10 = arith.constant 0 : index
    %10 = vector.load %arg5[%c0_9, %c0_10] : memref<1x128xf32, #tpu.memory_space<vmem>>, vector<1x128xf32>
    %11 = vector.broadcast %10 : vector<1x128xf32> to vector<128x128xf32>
    %12 = arith.addf %9, %11 : vector<128x128xf32>
    %cst_11 = arith.constant 0.000000e+00 : f32
    %13 = vector.broadcast %cst_11 : f32 to vector<128x128xf32>
    %14 = arith.maximumf %12, %13 : vector<128x128xf32>
    %c0_12 = arith.constant 0 : index
    %c0_13 = arith.constant 0 : index
    %15 = vector.load %arg6[%c0_12, %c0_13] : memref<128x128xf32, #tpu.memory_space<vmem>>, vector<128x128xf32>
    %cst_14 = arith.constant dense<0.000000e+00> : vector<128x128xf32>
    %16 = tpu.matmul %14, %15, %cst_14 {dimension_numbers = #tpu.dot_dimension_numbers<[1], [0], [0], [1], [0, 0, 1, 1], [], []>} : vector<128x128xf32>, vector<128x128xf32>, vector<128x128xf32> -> vector<128x128xf32>
    %c0_15 = arith.constant 0 : index
    %c0_16 = arith.constant 0 : index
    %17 = vector.load %arg7[%c0_15, %c0_16] : memref<1x128xf32, #tpu.memory_space<vmem>>, vector<1x128xf32>
    %18 = vector.broadcast %17 : vector<1x128xf32> to vector<128x128xf32>
    %19 = arith.addf %16, %18 : vector<128x128xf32>
    %cst_17 = arith.constant 0.000000e+00 : f32
    %20 = vector.broadcast %cst_17 : f32 to vector<128x128xf32>
    %21 = arith.maximumf %19, %20 : vector<128x128xf32>
    %c0_18 = arith.constant 0 : index
    %c0_19 = arith.constant 0 : index
    %22 = vector.load %arg8[%c0_18, %c0_19] : memref<128x128xf32, #tpu.memory_space<vmem>>, vector<128x128xf32>
    %cst_20 = arith.constant dense<0.000000e+00> : vector<128x128xf32>
    %23 = tpu.matmul %21, %22, %cst_20 {dimension_numbers = #tpu.dot_dimension_numbers<[1], [0], [0], [1], [0, 0, 1, 1], [], []>} : vector<128x128xf32>, vector<128x128xf32>, vector<128x128xf32> -> vector<128x128xf32>
    %c0_21 = arith.constant 0 : index
    %c0_22 = arith.constant 0 : index
    %24 = vector.load %arg9[%c0_21, %c0_22] : memref<1x128xf32, #tpu.memory_space<vmem>>, vector<1x128xf32>
    %25 = vector.broadcast %24 : vector<1x128xf32> to vector<128x128xf32>
    %26 = arith.addf %23, %25 : vector<128x128xf32>
    %cst_23 = arith.constant 0.000000e+00 : f32
    %27 = vector.broadcast %cst_23 : f32 to vector<128x128xf32>
    %28 = arith.maximumf %26, %27 : vector<128x128xf32>
    %c0_24 = arith.constant 0 : index
    %c0_25 = arith.constant 0 : index
    %29 = vector.load %arg10[%c0_24, %c0_25] : memref<128x128xf32, #tpu.memory_space<vmem>>, vector<128x128xf32>
    tpu.vector_store %arg10[%c0_24, %c0_25], %28 {strides = array<i32>} : memref<128x128xf32, #tpu.memory_space<vmem>>, vector<128x128xf32>,
    %c0_26 = arith.constant 0 : index
    %c0_27 = arith.constant 0 : index
    %30 = vector.load %arg11[%c0_26, %c0_27] : memref<128x128xf32, #tpu.memory_space<vmem>>, vector<128x128xf32>
    tpu.vector_store %arg11[%c0_26, %c0_27], %14 {strides = array<i32>} : memref<128x128xf32, #tpu.memory_space<vmem>>, vector<128x128xf32>,
    return
  }
  func.func @transform_0(%arg0: i32) -> (i32, i32) {
    %c0_i32 = arith.constant 0 : i32
    %c0_i32_0 = arith.constant 0 : i32
    return %arg0, %c0_i32 : i32, i32
  }
  func.func @transform_1(%arg0: i32) -> (i32, i32) {
    %c0_i32 = arith.constant 0 : i32
    %c0_i32_0 = arith.constant 0 : i32
    %c0_i32_1 = arith.constant 0 : i32
    return %c0_i32, %c0_i32_0 : i32, i32
  }
  func.func @transform_2(%arg0: i32) -> (i32, i32) {
    %c0_i32 = arith.constant 0 : i32
    %c0_i32_0 = arith.constant 0 : i32
    %c0_i32_1 = arith.constant 0 : i32
    return %c0_i32, %c0_i32_0 : i32, i32
  }
  func.func @transform_3(%arg0: i32) -> (i32, i32) {
    %c0_i32 = arith.constant 0 : i32
    %c0_i32_0 = arith.constant 0 : i32
    %c0_i32_1 = arith.constant 0 : i32
    return %c0_i32, %c0_i32_0 : i32, i32
  }
  func.func @transform_4(%arg0: i32) -> (i32, i32) {
    %c0_i32 = arith.constant 0 : i32
    %c0_i32_0 = arith.constant 0 : i32
    %c0_i32_1 = arith.constant 0 : i32
    return %c0_i32, %c0_i32_0 : i32, i32
  }
  func.func @transform_5(%arg0: i32) -> (i32, i32) {
    %c0_i32 = arith.constant 0 : i32
    %c0_i32_0 = arith.constant 0 : i32
    %c0_i32_1 = arith.constant 0 : i32
    return %c0_i32, %c0_i32_0 : i32, i32
  }
  func.func @transform_6(%arg0: i32) -> (i32, i32) {
    %c0_i32 = arith.constant 0 : i32
    %c0_i32_0 = arith.constant 0 : i32
    %c0_i32_1 = arith.constant 0 : i32
    return %c0_i32, %c0_i32_0 : i32, i32
  }
  func.func @transform_7(%arg0: i32) -> (i32, i32) {
    %c0_i32 = arith.constant 0 : i32
    %c0_i32_0 = arith.constant 0 : i32
    %c0_i32_1 = arith.constant 0 : i32
    return %c0_i32, %c0_i32_0 : i32, i32
  }
  func.func @transform_8(%arg0: i32) -> (i32, i32) {
    %c0_i32 = arith.constant 0 : i32
    %c0_i32_0 = arith.constant 0 : i32
    %c0_i32_1 = arith.constant 0 : i32
    return %c0_i32, %c0_i32_0 : i32, i32
  }
  func.func @transform_9(%arg0: i32) -> (i32, i32) {
    %c0_i32 = arith.constant 0 : i32
    %c0_i32_0 = arith.constant 0 : i32
    return %arg0, %c0_i32 : i32, i32
  }
  func.func @transform_10(%arg0: i32) -> (i32, i32) {
    %c0_i32 = arith.constant 0 : i32
    %c0_i32_0 = arith.constant 0 : i32
    return %arg0, %c0_i32 : i32, i32
  }
}

</mosaic_0001>

<llo_original>
// kernel: tpu_custom_call.1
$region0: #{tpu_custom_call.1}
  #allocation0 [shape = 'u32[]', space=smem, size = 0x4, offset = 0x4, fixed_abs, tag = 'smem constant byte address 0x4 - core index']
  #allocation1 [shape = 'u32[144,128]{1,0:T(1,128)}', space=vmem, size = 0x12000, scoped, tag = 'internal scratch']
  %s0 = inlined_call_operand.hbm [shape: f32[128,128], index: 0, kind: input, shape index: {}]
  %s1 = inlined_call_operand.hbm [shape: f32[128,128], index: 1, kind: input, shape index: {}]
  %s2 = inlined_call_operand.vmem [shape: f32[1,128], index: 2, kind: input, shape index: {}]
  %s3 = inlined_call_operand.hbm [shape: f32[128,128], index: 3, kind: input, shape index: {}]
  %s4 = inlined_call_operand.vmem [shape: f32[1,128], index: 4, kind: input, shape index: {}]
  %s5 = inlined_call_operand.hbm [shape: f32[128,128], index: 5, kind: input, shape index: {}]
  %s6 = inlined_call_operand.vmem [shape: f32[1,128], index: 6, kind: input, shape index: {}]
  %s7 = inlined_call_operand.hbm [shape: f32[128,128], index: 7, kind: input, shape index: {}]
  %s8 = inlined_call_operand.vmem [shape: f32[1,128], index: 8, kind: input, shape index: {}]
  %s9 = inlined_call_operand.hbm [shape: f32[128,128], index: 9, kind: output, shape index: {0}]
  %s10 = inlined_call_operand.hbm [shape: f32[128,128], index: 10, kind: output, shape index: {1}]
  %11 = xla_tuple %s9, %s10
  %s12 = sld [smem:[#allocation0]]
  $region74: #{tpu_custom_call.1} parent=0
    _
  %s14 = ssub.s32 1, %s12
  %s15 = scalar_select 0, %s14, %s12
  $region1: #{tpu_custom_call.1} parent=0
    #allocation2 [shape = 'u8[65536]{0}', space=vmem, size = 0x10000, scoped, tag = 'input window, operand 0, single buffered']
    #allocation3 [shape = 's32[1]{0}', space=sflag, size = 0x4, scoped, tag = 'scoped memory for tpu_custom_call.1']
    #allocation4 [shape = 's32[1]{0}', space=sflag, size = 0x4, scoped, tag = 'scoped memory for tpu_custom_call.1']
    #allocation5 [shape = 'u8[65536]{0}', space=vmem, size = 0x10000, scoped, tag = 'input window, operand 1, single buffered']
    #allocation6 [shape = 's32[1]{0}', space=sflag, size = 0x4, scoped, tag = 'scoped memory for tpu_custom_call.1']
    #allocation7 [shape = 'u8[65536]{0}', space=vmem, size = 0x10000, scoped, tag = 'input window, operand 3, single buffered']
    #allocation8 [shape = 'u8[65536]{0}', space=vmem, size = 0x10000, scoped, tag = 'input window, operand 5, single buffered']
    #allocation9 [shape = 's32[1]{0}', space=sflag, size = 0x4, scoped, tag = 'scoped memory for tpu_custom_call.1']
    #allocation10 [shape = 'u8[65536]{0}', space=vmem, size = 0x10000, scoped, tag = 'input window, operand 7, single buffered']
    #allocation11 [shape = 'u8[65536]{0}', space=vmem, size = 0x10000, scoped, tag = 'output window, operand 0, single buffered']
    #allocation12 [shape = 'u8[65536]{0}', space=vmem, size = 0x10000, scoped, tag = 'output window, operand 1, single buffered']
    #allocation13 [shape = 's32[1]{0}', space=sflag, size = 0x4, scoped, tag = 'scoped memory for tpu_custom_call.1']
    %16 = vsyncpa [#allocation3], 0
    %17 = vsyncpa [#allocation6], 0
    %18 = vsyncpa [#allocation9], 0
    %19 = vsyncpa [#allocation4], 0
    %20 = vsyncpa [#allocation13], 0
    // Predicated region
    $region2: #{tpu_custom_call.1} parent=1 // pred_check
      _
    $region3: #{tpu_custom_call.1} parent=1 // pred_check_branch
      %22 = sbr.rel (0) target = $region5
    $region4: #{tpu_custom_call.1} parent=1 // pred_region
      %s24 = ssub.s32 2048, 2048
      %25 = vsyncadd [#allocation3], %s24
      %s26 = sshll.u32 [#allocation2], 4
      %s27 = int_to_ptr.vmem [resolvable:$true] %s26
      %32 = dma.hbm_to_vmem [thread:$0]  %s0, 2048, %s27, [#allocation3], 128, 128, 8
    $region5: #{tpu_custom_call.1} parent=1 // pred_fallthru
      _
    // Predicated region
    $region6: #{tpu_custom_call.1} parent=1 // pred_check
      _
    $region7: #{tpu_custom_call.1} parent=1 // pred_check_branch
      %34 = sbr.rel (0) target = $region9
    $region8: #{tpu_custom_call.1} parent=1 // pred_region
      %s36 = ssub.s32 2048, 2048
      %37 = vsyncadd [#allocation6], %s36
      %s38 = sshll.u32 [#allocation5], 4
      %s39 = int_to_ptr.vmem [resolvable:$true] %s38
      %44 = dma.hbm_to_vmem [thread:$0]  %s1, 2048, %s39, [#allocation6], 128, 128, 8
    $region9: #{tpu_custom_call.1} parent=1 // pred_fallthru
      _
    // Predicated region
    $region10: #{tpu_custom_call.1} parent=1 // pred_check
      _
    $region11: #{tpu_custom_call.1} parent=1 // pred_check_branch
      %46 = sbr.rel (0) target = $region13
    $region12: #{tpu_custom_call.1} parent=1 // pred_region
      _
    $region13: #{tpu_custom_call.1} parent=1 // pred_fallthru
      _
    // Predicated region
    $region14: #{tpu_custom_call.1} parent=1 // pred_check
      _
    $region15: #{tpu_custom_call.1} parent=1 // pred_check_branch
      %48 = sbr.rel (0) target = $region17
    $region16: #{tpu_custom_call.1} parent=1 // pred_region
      %s50 = ssub.s32 2048, 2048
      %51 = vsyncadd [#allocation6], %s50
      %s52 = sshll.u32 [#allocation7], 4
      %s53 = int_to_ptr.vmem [resolvable:$true] %s52
      %58 = dma.hbm_to_vmem [thread:$0]  %s3, 2048, %s53, [#allocation6], 128, 128, 8
    $region17: #{tpu_custom_call.1} parent=1 // pred_fallthru
      _
    // Predicated region
    $region18: #{tpu_custom_call.1} parent=1 // pred_check
      _
    $region19: #{tpu_custom_call.1} parent=1 // pred_check_branch
      %60 = sbr.rel (0) target = $region21
    $region20: #{tpu_custom_call.1} parent=1 // pred_region
      _
    $region21: #{tpu_custom_call.1} parent=1 // pred_fallthru
      _
    // Predicated region
    $region22: #{tpu_custom_call.1} parent=1 // pred_check
      _
    $region23: #{tpu_custom_call.1} parent=1 // pred_check_branch
      %62 = sbr.rel (0) target = $region25
    $region24: #{tpu_custom_call.1} parent=1 // pred_region
      %s64 = ssub.s32 2048, 2048
      %65 = vsyncadd [#allocation9], %s64
      %s66 = sshll.u32 [#allocation8], 4
      %s67 = int_to_ptr.vmem [resolvable:$true] %s66
      %72 = dma.hbm_to_vmem [thread:$0]  %s5, 2048, %s67, [#allocation9], 128, 128, 8
    $region25: #{tpu_custom_call.1} parent=1 // pred_fallthru
      _
    // Predicated region
    $region26: #{tpu_custom_call.1} parent=1 // pred_check
      _
    $region27: #{tpu_custom_call.1} parent=1 // pred_check_branch
      %74 = sbr.rel (0) target = $region29
    $region28: #{tpu_custom_call.1} parent=1 // pred_region
      _
    $region29: #{tpu_custom_call.1} parent=1 // pred_fallthru
      _
    // Predicated region
    $region30: #{tpu_custom_call.1} parent=1 // pred_check
      _
    $region31: #{tpu_custom_call.1} parent=1 // pred_check_branch
      %76 = sbr.rel (0) target = $region33
    $region32: #{tpu_custom_call.1} parent=1 // pred_region
      %s78 = ssub.s32 2048, 2048
      %79 = vsyncadd [#allocation9], %s78
      %s80 = sshll.u32 [#allocation10], 4
      %s81 = int_to_ptr.vmem [resolvable:$true] %s80
      %86 = dma.hbm_to_vmem [thread:$0]  %s7, 2048, %s81, [#allocation9], 128, 128, 8
    $region33: #{tpu_custom_call.1} parent=1 // pred_fallthru
      _
    // Predicated region
    $region34: #{tpu_custom_call.1} parent=1 // pred_check
      _
    $region35: #{tpu_custom_call.1} parent=1 // pred_check_branch
      %88 = sbr.rel (0) target = $region37
    $region36: #{tpu_custom_call.1} parent=1 // pred_region
      _
    $region37: #{tpu_custom_call.1} parent=1 // pred_fallthru
      _
    // Predicated region
    $region38: #{tpu_custom_call.1} parent=1 // pred_check
      _
    $region39: #{tpu_custom_call.1} parent=1 // pred_check_branch
      %90 = sbr.rel (0) target = $region41
    $region40: #{tpu_custom_call.1} parent=1 // pred_region
      %91 = dma.done [#allocation3], 2048
    $region41: #{tpu_custom_call.1} parent=1 // pred_fallthru
      _
    // Predicated region
    $region42: #{tpu_custom_call.1} parent=1 // pred_check
      _
    $region43: #{tpu_custom_call.1} parent=1 // pred_check_branch
      %93 = sbr.rel (0) target = $region45
    $region44: #{tpu_custom_call.1} parent=1 // pred_region
      %94 = dma.done [#allocation6], 2048
    $region45: #{tpu_custom_call.1} parent=1 // pred_fallthru
      _
    // Predicated region
    $region46: #{tpu_custom_call.1} parent=1 // pred_check
      _
    $region47: #{tpu_custom_call.1} parent=1 // pred_check_branch
      %96 = sbr.rel (0) target = $region49
    $region48: #{tpu_custom_call.1} parent=1 // pred_region
      %97 = dma.done [#allocation6], 2048
    $region49: #{tpu_custom_call.1} parent=1 // pred_fallthru
      _
    // Predicated region
    $region50: #{tpu_custom_call.1} parent=1 // pred_check
      _
    $region51: #{tpu_custom_call.1} parent=1 // pred_check_branch
      %99 = sbr.rel (0) target = $region53
    $region52: #{tpu_custom_call.1} parent=1 // pred_region
      %100 = dma.done [#allocation9], 2048
    $region53: #{tpu_custom_call.1} parent=1 // pred_fallthru
      _
    // Predicated region
    $region54: #{tpu_custom_call.1} parent=1 // pred_check
      _
    $region55: #{tpu_custom_call.1} parent=1 // pred_check_branch
      %102 = sbr.rel (0) target = $region57
    $region56: #{tpu_custom_call.1} parent=1 // pred_region
      %103 = dma.done [#allocation9], 2048
    $region57: #{tpu_custom_call.1} parent=1 // pred_fallthru
      _
    %v104 = vld [vmem:[#allocation2] sm:$0xff]
    %v105 = vld [vmem:[#allocation2 + $0x8] sm:$0xff]
    %v106 = vld [vmem:[#allocation2 + $0x10] sm:$0xff]
    %v107 = vld [vmem:[#allocation2 + $0x18] sm:$0xff]
    %v108 = vld [vmem:[#allocation2 + $0x20] sm:$0xff]
    %v109 = vld [vmem:[#allocation2 + $0x28] sm:$0xff]
    %v110 = vld [vmem:[#allocation2 + $0x30] sm:$0xff]
    %v111 = vld [vmem:[#allocation2 + $0x38] sm:$0xff]
    %v112 = vld [vmem:[#allocation2 + $0x40] sm:$0xff]
    %v113 = vld [vmem:[#allocation2 + $0x48] sm:$0xff]
    %v114 = vld [vmem:[#allocation2 + $0x50] sm:$0xff]
    %v115 = vld [vmem:[#allocation2 + $0x58] sm:$0xff]
    %v116 = vld [vmem:[#allocation2 + $0x60] sm:$0xff]
    %v117 = vld [vmem:[#allocation2 + $0x68] sm:$0xff]
    %v118 = vld [vmem:[#allocation2 + $0x70] sm:$0xff]
    %v119 = vld [vmem:[#allocation2 + $0x78] sm:$0xff]
    %v120 = vld [vmem:[#allocation5] sm:$0xff]
    %v121 = vld [vmem:[#allocation5 + $0x8] sm:$0xff]
    %v122 = vld [vmem:[#allocation5 + $0x10] sm:$0xff]
    %v123 = vld [vmem:[#allocation5 + $0x18] sm:$0xff]
    %v124 = vld [vmem:[#allocation5 + $0x20] sm:$0xff]
    %v125 = vld [vmem:[#allocation5 + $0x28] sm:$0xff]
    %v126 = vld [vmem:[#allocation5 + $0x30] sm:$0xff]
    %v127 = vld [vmem:[#allocation5 + $0x38] sm:$0xff]
    %v128 = vld [vmem:[#allocation5 + $0x40] sm:$0xff]
    %v129 = vld [vmem:[#allocation5 + $0x48] sm:$0xff]
    %v130 = vld [vmem:[#allocation5 + $0x50] sm:$0xff]
    %v131 = vld [vmem:[#allocation5 + $0x58] sm:$0xff]
    %v132 = vld [vmem:[#allocation5 + $0x60] sm:$0xff]
    %v133 = vld [vmem:[#allocation5 + $0x68] sm:$0xff]
    %v134 = vld [vmem:[#allocation5 + $0x70] sm:$0xff]
    %v135 = vld [vmem:[#allocation5 + $0x78] sm:$0xff]
    %v136 = vld [vmem:[%s2] sm:$0x1]
    %v138 = vlaneseq
    %v139 = vshrl.u32 %v138, 7
    %v140 = vsub.s32 0, %v139
    %v141 = vrot.slane %v136, %v140
    %143 = vmatprep.subr.mxu0 0.0
    %144 = vmatpush1.msra.mxu0 %v135
    %145 = vmatprep.subr.mxu0 0.0
    %146 = vmatpush1.msra.mxu0 %v134
    %147 = vmatprep.subr.mxu0 0.0
    %148 = vmatpush1.msra.mxu0 %v133
    %149 = vmatprep.subr.mxu0 0.0
    %150 = vmatpush1.msra.mxu0 %v132
    %151 = vmatprep.subr.mxu0 0.0
    %152 = vmatpush1.msra.mxu0 %v131
    %153 = vmatprep.subr.mxu0 0.0
    %154 = vmatpush1.msra.mxu0 %v130
    %155 = vmatprep.subr.mxu0 0.0
    %156 = vmatpush1.msra.mxu0 %v129
    %157 = vmatprep.subr.mxu0 0.0
    %158 = vmatpush1.msra.mxu0 %v128
    %159 = vmatprep.subr.mxu0 0.0
    %160 = vmatpush1.msra.mxu0 %v127
    %161 = vmatprep.subr.mxu0 0.0
    %162 = vmatpush1.msra.mxu0 %v126
    %163 = vmatprep.subr.mxu0 0.0
    %164 = vmatpush1.msra.mxu0 %v125
    %165 = vmatprep.subr.mxu0 0.0
    %166 = vmatpush1.msra.mxu0 %v124
    %167 = vmatprep.subr.mxu0 0.0
    %168 = vmatpush1.msra.mxu0 %v123
    %169 = vmatprep.subr.mxu0 0.0
    %170 = vmatpush1.msra.mxu0 %v122
    %171 = vmatprep.subr.mxu0 0.0
    %172 = vmatpush1.msra.mxu0 %v121
    %173 = vmatprep.subr.mxu0 0.0
    %174 = vmatpush1.msra.mxu0 %v120
    %175 = vmatprep.subr.mxu0 0.0
    %176 = vmatpush2.msra.mxu0 0.0
    %177 = vmatprep.subr.mxu0 0.0
    %178 = vmatpush2.msra.mxu0 0.0
    %179 = vmatprep.subr.mxu0 0.0
    %180 = vmatpush2.msra.mxu0 0.0
    %181 = vmatprep.subr.mxu0 0.0
    %182 = vmatpush2.msra.mxu0 0.0
    %183 = vmatprep.subr.mxu0 0.0
    %184 = vmatpush2.msra.mxu0 0.0
    %185 = vmatprep.subr.mxu0 0.0
    %186 = vmatpush2.msra.mxu0 0.0
    %187 = vmatprep.subr.mxu0 0.0
    %188 = vmatpush2.msra.mxu0 0.0
    %189 = vmatprep.subr.mxu0 0.0
    %190 = vmatpush2.msra.mxu0 0.0
    %191 = vmatprep.subr.mxu0 0.0
    %192 = vmatpush2.msra.mxu0 0.0
    %193 = vmatprep.subr.mxu0 0.0
    %194 = vmatpush2.msra.mxu0 0.0
    %195 = vmatprep.subr.mxu0 0.0
    %196 = vmatpush2.msra.mxu0 0.0
    %197 = vmatprep.subr.mxu0 0.0
    %198 = vmatpush2.msra.mxu0 0.0
    %199 = vmatprep.subr.mxu0 0.0
    %200 = vmatpush2.msra.mxu0 0.0
    %201 = vmatprep.subr.mxu0 0.0
    %202 = vmatpush2.msra.mxu0 0.0
    %203 = vmatprep.subr.mxu0 0.0
    %204 = vmatpush2.msra.mxu0 0.0
    %205 = vmatprep.subr.mxu0 0.0
    %206 = vmatpush2.msra.mxu0 0.0
    %207 = vmatprep.mubr.f32.mxu0 0.0
    %208 = vmatmul.mubr.f32.gmra.mxu0 %v104
    %v209 = vpop.f32.mrf.mxu0
    %v210 = vadd.f32 %v141, %v209
    %v211 = vpop.f32.mrf.mxu0
    %212 = vmatprep.mubr.f32.mxu0 0.0
    %213 = vmatmul.mubr.f32.gmra.mxu0 %v105
    %v214 = vpop.f32.mrf.mxu0
    %v215 = vadd.f32 %v141, %v214
    %v216 = vpop.f32.mrf.mxu0
    %217 = vmatprep.mubr.f32.mxu0 0.0
    %218 = vmatmul.mubr.f32.gmra.mxu0 %v106
    %v219 = vpop.f32.mrf.mxu0
    %v220 = vadd.f32 %v141, %v219
    %v221 = vpop.f32.mrf.mxu0
    %222 = vmatprep.mubr.f32.mxu0 0.0
    %223 = vmatmul.mubr.f32.gmra.mxu0 %v107
    %v224 = vpop.f32.mrf.mxu0
    %v225 = vadd.f32 %v141, %v224
    %v226 = vpop.f32.mrf.mxu0
    %227 = vmatprep.mubr.f32.mxu0 0.0
    %228 = vmatmul.mubr.f32.gmra.mxu0 %v108
    %v229 = vpop.f32.mrf.mxu0
    %v230 = vadd.f32 %v141, %v229
    %v231 = vpop.f32.mrf.mxu0
    %232 = vmatprep.mubr.f32.mxu0 0.0
    %233 = vmatmul.mubr.f32.gmra.mxu0 %v109
    %v234 = vpop.f32.mrf.mxu0
    %v235 = vadd.f32 %v141, %v234
    %v236 = vpop.f32.mrf.mxu0
    %237 = vmatprep.mubr.f32.mxu0 0.0
    %238 = vmatmul.mubr.f32.gmra.mxu0 %v110
    %v239 = vpop.f32.mrf.mxu0
    %v240 = vadd.f32 %v141, %v239
    %v241 = vpop.f32.mrf.mxu0
    %242 = vmatprep.mubr.f32.mxu0 0.0
    %243 = vmatmul.mubr.f32.gmra.mxu0 %v111
    %v244 = vpop.f32.mrf.mxu0
    %v245 = vadd.f32 %v141, %v244
    %v246 = vpop.f32.mrf.mxu0
    %247 = vmatprep.mubr.f32.mxu0 0.0
    %248 = vmatmul.mubr.f32.gmra.mxu0 %v112
    %v249 = vpop.f32.mrf.mxu0
    %v250 = vadd.f32 %v141, %v249
    %v251 = vpop.f32.mrf.mxu0
    %252 = vmatprep.mubr.f32.mxu0 0.0
    %253 = vmatmul.mubr.f32.gmra.mxu0 %v113
    %v254 = vpop.f32.mrf.mxu0
    %v255 = vadd.f32 %v141, %v254
    %v256 = vpop.f32.mrf.mxu0
    %257 = vmatprep.mubr.f32.mxu0 0.0
    %258 = vmatmul.mubr.f32.gmra.mxu0 %v114
    %v259 = vpop.f32.mrf.mxu0
    %v260 = vadd.f32 %v141, %v259
    %v261 = vpop.f32.mrf.mxu0
    %262 = vmatprep.mubr.f32.mxu0 0.0
    %263 = vmatmul.mubr.f32.gmra.mxu0 %v115
    %v264 = vpop.f32.mrf.mxu0
    %v265 = vadd.f32 %v141, %v264
    %v266 = vpop.f32.mrf.mxu0
    %267 = vmatprep.mubr.f32.mxu0 0.0
    %268 = vmatmul.mubr.f32.gmra.mxu0 %v116
    %v269 = vpop.f32.mrf.mxu0
    %v270 = vadd.f32 %v141, %v269
    %v271 = vpop.f32.mrf.mxu0
    %272 = vmatprep.mubr.f32.mxu0 0.0
    %273 = vmatmul.mubr.f32.gmra.mxu0 %v117
    %v274 = vpop.f32.mrf.mxu0
    %v275 = vadd.f32 %v141, %v274
    %v276 = vpop.f32.mrf.mxu0
    %277 = vmatprep.mubr.f32.mxu0 0.0
    %278 = vmatmul.mubr.f32.gmra.mxu0 %v118
    %v279 = vpop.f32.mrf.mxu0
    %v280 = vadd.f32 %v141, %v279
    %v281 = vpop.f32.mrf.mxu0
    %282 = vmatprep.mubr.f32.mxu0 0.0
    %283 = vmatmul.mubr.f32.gmra.mxu0 %v119
    %v284 = vpop.f32.mrf.mxu0
    %v285 = vadd.f32 %v141, %v284
    %v286 = vpop.f32.mrf.mxu0
    %287 = vdwg.mxu0
    %v288 = vmax.f32 %v210, 0.0
    %v289 = vmax.f32 %v215, 0.0
    %v290 = vmax.f32 %v220, 0.0
    %v291 = vmax.f32 %v225, 0.0
    %v292 = vmax.f32 %v230, 0.0
    %v293 = vmax.f32 %v235, 0.0
    %v294 = vmax.f32 %v240, 0.0
    %v295 = vmax.f32 %v245, 0.0
    %v296 = vmax.f32 %v250, 0.0
    %v297 = vmax.f32 %v255, 0.0
    %v298 = vmax.f32 %v260, 0.0
    %v299 = vmax.f32 %v265, 0.0
    %v300 = vmax.f32 %v270, 0.0
    %v301 = vmax.f32 %v275, 0.0
    %v302 = vmax.f32 %v280, 0.0
    %v303 = vmax.f32 %v285, 0.0
    %v304 = vld [vmem:[#allocation7] sm:$0xff]
    %v305 = vld [vmem:[#allocation7 + $0x8] sm:$0xff]
    %v306 = vld [vmem:[#allocation7 + $0x10] sm:$0xff]
    %v307 = vld [vmem:[#allocation7 + $0x18] sm:$0xff]
    %v308 = vld [vmem:[#allocation7 + $0x20] sm:$0xff]
    %v309 = vld [vmem:[#allocation7 + $0x28] sm:$0xff]
    %v310 = vld [vmem:[#allocation7 + $0x30] sm:$0xff]
    %v311 = vld [vmem:[#allocation7 + $0x38] sm:$0xff]
    %v312 = vld [vmem:[#allocation7 + $0x40] sm:$0xff]
    %v313 = vld [vmem:[#allocation7 + $0x48] sm:$0xff]
    %v314 = vld [vmem:[#allocation7 + $0x50] sm:$0xff]
    %v315 = vld [vmem:[#allocation7 + $0x58] sm:$0xff]
    %v316 = vld [vmem:[#allocation7 + $0x60] sm:$0xff]
    %v317 = vld [vmem:[#allocation7 + $0x68] sm:$0xff]
    %v318 = vld [vmem:[#allocation7 + $0x70] sm:$0xff]
    %v319 = vld [vmem:[#allocation7 + $0x78] sm:$0xff]
    %v320 = vld [vmem:[%s4] sm:$0x1]
    %v322 = vlaneseq
    %v323 = vshrl.u32 %v322, 7
    %v324 = vsub.s32 0, %v323
    %v325 = vrot.slane %v320, %v324
    %327 = vmatprep.subr.mxu0 0.0
    %328 = vmatpush1.msra.mxu0 %v319
    %329 = vmatprep.subr.mxu0 0.0
    %330 = vmatpush1.msra.mxu0 %v318
    %331 = vmatprep.subr.mxu0 0.0
    %332 = vmatpush1.msra.mxu0 %v317
    %333 = vmatprep.subr.mxu0 0.0
    %334 = vmatpush1.msra.mxu0 %v316
    %335 = vmatprep.subr.mxu0 0.0
    %336 = vmatpush1.msra.mxu0 %v315
    %337 = vmatprep.subr.mxu0 0.0
    %338 = vmatpush1.msra.mxu0 %v314
    %339 = vmatprep.subr.mxu0 0.0
    %340 = vmatpush1.msra.mxu0 %v313
    %341 = vmatprep.subr.mxu0 0.0
    %342 = vmatpush1.msra.mxu0 %v312
    %343 = vmatprep.subr.mxu0 0.0
    %344 = vmatpush1.msra.mxu0 %v311
    %345 = vmatprep.subr.mxu0 0.0
    %346 = vmatpush1.msra.mxu0 %v310
    %347 = vmatprep.subr.mxu0 0.0
    %348 = vmatpush1.msra.mxu0 %v309
    %349 = vmatprep.subr.mxu0 0.0
    %350 = vmatpush1.msra.mxu0 %v308
    %351 = vmatprep.subr.mxu0 0.0
    %352 = vmatpush1.msra.mxu0 %v307
    %353 = vmatprep.subr.mxu0 0.0
    %354 = vmatpush1.msra.mxu0 %v306
    %355 = vmatprep.subr.mxu0 0.0
    %356 = vmatpush1.msra.mxu0 %v305
    %357 = vmatprep.subr.mxu0 0.0
    %358 = vmatpush1.msra.mxu0 %v304
    %359 = vmatprep.subr.mxu0 0.0
    %360 = vmatpush2.msra.mxu0 0.0
    %361 = vmatprep.subr.mxu0 0.0
    %362 = vmatpush2.msra.mxu0 0.0
    %363 = vmatprep.subr.mxu0 0.0
    %364 = vmatpush2.msra.mxu0 0.0
    %365 = vmatprep.subr.mxu0 0.0
    %366 = vmatpush2.msra.mxu0 0.0
    %367 = vmatprep.subr.mxu0 0.0
    %368 = vmatpush2.msra.mxu0 0.0
    %369 = vmatprep.subr.mxu0 0.0
    %370 = vmatpush2.msra.mxu0 0.0
    %371 = vmatprep.subr.mxu0 0.0
    %372 = vmatpush2.msra.mxu0 0.0
    %373 = vmatprep.subr.mxu0 0.0
    %374 = vmatpush2.msra.mxu0 0.0
    %375 = vmatprep.subr.mxu0 0.0
    %376 = vmatpush2.msra.mxu0 0.0
    %377 = vmatprep.subr.mxu0 0.0
    %378 = vmatpush2.msra.mxu0 0.0
    %379 = vmatprep.subr.mxu0 0.0
    %380 = vmatpush2.msra.mxu0 0.0
    %381 = vmatprep.subr.mxu0 0.0
    %382 = vmatpush2.msra.mxu0 0.0
    %383 = vmatprep.subr.mxu0 0.0
    %384 = vmatpush2.msra.mxu0 0.0
    %385 = vmatprep.subr.mxu0 0.0
    %386 = vmatpush2.msra.mxu0 0.0
    %387 = vmatprep.subr.mxu0 0.0
    %388 = vmatpush2.msra.mxu0 0.0
    %389 = vmatprep.subr.mxu0 0.0
    %390 = vmatpush2.msra.mxu0 0.0
    %391 = vmatprep.mubr.f32.mxu0 0.0
    %392 = vmatmul.mubr.f32.gmra.mxu0 %v288
    %v393 = vpop.f32.mrf.mxu0
    %v394 = vadd.f32 %v325, %v393
    %v395 = vpop.f32.mrf.mxu0
    %396 = vmatprep.mubr.f32.mxu0 0.0
    %397 = vmatmul.mubr.f32.gmra.mxu0 %v289
    %v398 = vpop.f32.mrf.mxu0
    %v399 = vadd.f32 %v325, %v398
    %v400 = vpop.f32.mrf.mxu0
    %401 = vmatprep.mubr.f32.mxu0 0.0
    %402 = vmatmul.mubr.f32.gmra.mxu0 %v290
    %v403 = vpop.f32.mrf.mxu0
    %v404 = vadd.f32 %v325, %v403
    %v405 = vpop.f32.mrf.mxu0
    %406 = vmatprep.mubr.f32.mxu0 0.0
    %407 = vmatmul.mubr.f32.gmra.mxu0 %v291
    %v408 = vpop.f32.mrf.mxu0
    %v409 = vadd.f32 %v325, %v408
    %v410 = vpop.f32.mrf.mxu0
    %411 = vmatprep.mubr.f32.mxu0 0.0
    %412 = vmatmul.mubr.f32.gmra.mxu0 %v292
    %v413 = vpop.f32.mrf.mxu0
    %v414 = vadd.f32 %v325, %v413
    %v415 = vpop.f32.mrf.mxu0
    %416 = vmatprep.mubr.f32.mxu0 0.0
    %417 = vmatmul.mubr.f32.gmra.mxu0 %v293
    %v418 = vpop.f32.mrf.mxu0
    %v419 = vadd.f32 %v325, %v418
    %v420 = vpop.f32.mrf.mxu0
    %421 = vmatprep.mubr.f32.mxu0 0.0
    %422 = vmatmul.mubr.f32.gmra.mxu0 %v294
    %v423 = vpop.f32.mrf.mxu0
    %v424 = vadd.f32 %v325, %v423
    %v425 = vpop.f32.mrf.mxu0
    %426 = vmatprep.mubr.f32.mxu0 0.0
    %427 = vmatmul.mubr.f32.gmra.mxu0 %v295
    %v428 = vpop.f32.mrf.mxu0
    %v429 = vadd.f32 %v325, %v428
    %v430 = vpop.f32.mrf.mxu0
    %431 = vmatprep.mubr.f32.mxu0 0.0
    %432 = vmatmul.mubr.f32.gmra.mxu0 %v296
    %v433 = vpop.f32.mrf.mxu0
    %v434 = vadd.f32 %v325, %v433
    %v435 = vpop.f32.mrf.mxu0
    %436 = vmatprep.mubr.f32.mxu0 0.0
    %437 = vmatmul.mubr.f32.gmra.mxu0 %v297
    %v438 = vpop.f32.mrf.mxu0
    %v439 = vadd.f32 %v325, %v438
    %v440 = vpop.f32.mrf.mxu0
    %441 = vmatprep.mubr.f32.mxu0 0.0
    %442 = vmatmul.mubr.f32.gmra.mxu0 %v298
    %v443 = vpop.f32.mrf.mxu0
    %v444 = vadd.f32 %v325, %v443
    %v445 = vpop.f32.mrf.mxu0
    %446 = vmatprep.mubr.f32.mxu0 0.0
    %447 = vmatmul.mubr.f32.gmra.mxu0 %v299
    %v448 = vpop.f32.mrf.mxu0
    %v449 = vadd.f32 %v325, %v448
    %v450 = vpop.f32.mrf.mxu0
    %451 = vmatprep.mubr.f32.mxu0 0.0
    %452 = vmatmul.mubr.f32.gmra.mxu0 %v300
    %v453 = vpop.f32.mrf.mxu0
    %v454 = vadd.f32 %v325, %v453
    %v455 = vpop.f32.mrf.mxu0
    %456 = vmatprep.mubr.f32.mxu0 0.0
    %457 = vmatmul.mubr.f32.gmra.mxu0 %v301
    %v458 = vpop.f32.mrf.mxu0
    %v459 = vadd.f32 %v325, %v458
    %v460 = vpop.f32.mrf.mxu0
    %461 = vmatprep.mubr.f32.mxu0 0.0
    %462 = vmatmul.mubr.f32.gmra.mxu0 %v302
    %v463 = vpop.f32.mrf.mxu0
    %v464 = vadd.f32 %v325, %v463
    %v465 = vpop.f32.mrf.mxu0
    %466 = vmatprep.mubr.f32.mxu0 0.0
    %467 = vmatmul.mubr.f32.gmra.mxu0 %v303
    %v468 = vpop.f32.mrf.mxu0
    %v469 = vadd.f32 %v325, %v468
    %v470 = vpop.f32.mrf.mxu0
    %471 = vdwg.mxu0
    %v472 = vmax.f32 %v394, 0.0
    %v473 = vmax.f32 %v399, 0.0
    %v474 = vmax.f32 %v404, 0.0
    %v475 = vmax.f32 %v409, 0.0
    %v476 = vmax.f32 %v414, 0.0
    %v477 = vmax.f32 %v419, 0.0
    %v478 = vmax.f32 %v424, 0.0
    %v479 = vmax.f32 %v429, 0.0
    %v480 = vmax.f32 %v434, 0.0
    %v481 = vmax.f32 %v439, 0.0
    %v482 = vmax.f32 %v444, 0.0
    %v483 = vmax.f32 %v449, 0.0
    %v484 = vmax.f32 %v454, 0.0
    %v485 = vmax.f32 %v459, 0.0
    %v486 = vmax.f32 %v464, 0.0
    %v487 = vmax.f32 %v469, 0.0
    %v488 = vld [vmem:[#allocation8] sm:$0xff]
    %v489 = vld [vmem:[#allocation8 + $0x8] sm:$0xff]
    %v490 = vld [vmem:[#allocation8 + $0x10] sm:$0xff]
    %v491 = vld [vmem:[#allocation8 + $0x18] sm:$0xff]
    %v492 = vld [vmem:[#allocation8 + $0x20] sm:$0xff]
    %v493 = vld [vmem:[#allocation8 + $0x28] sm:$0xff]
    %v494 = vld [vmem:[#allocation8 + $0x30] sm:$0xff]
    %v495 = vld [vmem:[#allocation8 + $0x38] sm:$0xff]
    %v496 = vld [vmem:[#allocation8 + $0x40] sm:$0xff]
    %v497 = vld [vmem:[#allocation8 + $0x48] sm:$0xff]
    %v498 = vld [vmem:[#allocation8 + $0x50] sm:$0xff]
    %v499 = vld [vmem:[#allocation8 + $0x58] sm:$0xff]
    %v500 = vld [vmem:[#allocation8 + $0x60] sm:$0xff]
    %v501 = vld [vmem:[#allocation8 + $0x68] sm:$0xff]
    %v502 = vld [vmem:[#allocation8 + $0x70] sm:$0xff]
    %v503 = vld [vmem:[#allocation8 + $0x78] sm:$0xff]
    %v504 = vld [vmem:[%s6] sm:$0x1]
    %v506 = vlaneseq
    %v507 = vshrl.u32 %v506, 7
    %v508 = vsub.s32 0, %v507
    %v509 = vrot.slane %v504, %v508
    %511 = vmatprep.subr.mxu0 0.0
    %512 = vmatpush1.msra.mxu0 %v503
    %513 = vmatprep.subr.mxu0 0.0
    %514 = vmatpush1.msra.mxu0 %v502
    %515 = vmatprep.subr.mxu0 0.0
    %516 = vmatpush1.msra.mxu0 %v501
    %517 = vmatprep.subr.mxu0 0.0
    %518 = vmatpush1.msra.mxu0 %v500
    %519 = vmatprep.subr.mxu0 0.0
    %520 = vmatpush1.msra.mxu0 %v499
    %521 = vmatprep.subr.mxu0 0.0
    %522 = vmatpush1.msra.mxu0 %v498
    %523 = vmatprep.subr.mxu0 0.0
    %524 = vmatpush1.msra.mxu0 %v497
    %525 = vmatprep.subr.mxu0 0.0
    %526 = vmatpush1.msra.mxu0 %v496
    %527 = vmatprep.subr.mxu0 0.0
    %528 = vmatpush1.msra.mxu0 %v495
    %529 = vmatprep.subr.mxu0 0.0
    %530 = vmatpush1.msra.mxu0 %v494
    %531 = vmatprep.subr.mxu0 0.0
    %532 = vmatpush1.msra.mxu0 %v493
    %533 = vmatprep.subr.mxu0 0.0
    %534 = vmatpush1.msra.mxu0 %v492
    %535 = vmatprep.subr.mxu0 0.0
    %536 = vmatpush1.msra.mxu0 %v491
    %537 = vmatprep.subr.mxu0 0.0
    %538 = vmatpush1.msra.mxu0 %v490
    %539 = vmatprep.subr.mxu0 0.0
    %540 = vmatpush1.msra.mxu0 %v489
    %541 = vmatprep.subr.mxu0 0.0
    %542 = vmatpush1.msra.mxu0 %v488
    %543 = vmatprep.subr.mxu0 0.0
    %544 = vmatpush2.msra.mxu0 0.0
    %545 = vmatprep.subr.mxu0 0.0
    %546 = vmatpush2.msra.mxu0 0.0
    %547 = vmatprep.subr.mxu0 0.0
    %548 = vmatpush2.msra.mxu0 0.0
    %549 = vmatprep.subr.mxu0 0.0
    %550 = vmatpush2.msra.mxu0 0.0
    %551 = vmatprep.subr.mxu0 0.0
    %552 = vmatpush2.msra.mxu0 0.0
    %553 = vmatprep.subr.mxu0 0.0
    %554 = vmatpush2.msra.mxu0 0.0
    %555 = vmatprep.subr.mxu0 0.0
    %556 = vmatpush2.msra.mxu0 0.0
    %557 = vmatprep.subr.mxu0 0.0
    %558 = vmatpush2.msra.mxu0 0.0
    %559 = vmatprep.subr.mxu0 0.0
    %560 = vmatpush2.msra.mxu0 0.0
    %561 = vmatprep.subr.mxu0 0.0
    %562 = vmatpush2.msra.mxu0 0.0
    %563 = vmatprep.subr.mxu0 0.0
    %564 = vmatpush2.msra.mxu0 0.0
    %565 = vmatprep.subr.mxu0 0.0
    %566 = vmatpush2.msra.mxu0 0.0
    %567 = vmatprep.subr.mxu0 0.0
    %568 = vmatpush2.msra.mxu0 0.0
    %569 = vmatprep.subr.mxu0 0.0
    %570 = vmatpush2.msra.mxu0 0.0
    %571 = vmatprep.subr.mxu0 0.0
    %572 = vmatpush2.msra.mxu0 0.0
    %573 = vmatprep.subr.mxu0 0.0
    %574 = vmatpush2.msra.mxu0 0.0
    %575 = vmatprep.mubr.f32.mxu0 0.0
    %576 = vmatmul.mubr.f32.gmra.mxu0 %v472
    %v577 = vpop.f32.mrf.mxu0
    %v578 = vadd.f32 %v509, %v577
    %v579 = vpop.f32.mrf.mxu0
    %580 = vmatprep.mubr.f32.mxu0 0.0
    %581 = vmatmul.mubr.f32.gmra.mxu0 %v473
    %v582 = vpop.f32.mrf.mxu0
    %v583 = vadd.f32 %v509, %v582
    %v584 = vpop.f32.mrf.mxu0
    %585 = vmatprep.mubr.f32.mxu0 0.0
    %586 = vmatmul.mubr.f32.gmra.mxu0 %v474
    %v587 = vpop.f32.mrf.mxu0
    %v588 = vadd.f32 %v509, %v587
    %v589 = vpop.f32.mrf.mxu0
    %590 = vmatprep.mubr.f32.mxu0 0.0
    %591 = vmatmul.mubr.f32.gmra.mxu0 %v475
    %v592 = vpop.f32.mrf.mxu0
    %v593 = vadd.f32 %v509, %v592
    %v594 = vpop.f32.mrf.mxu0
    %595 = vmatprep.mubr.f32.mxu0 0.0
    %596 = vmatmul.mubr.f32.gmra.mxu0 %v476
    %v597 = vpop.f32.mrf.mxu0
    %v598 = vadd.f32 %v509, %v597
    %v599 = vpop.f32.mrf.mxu0
    %600 = vmatprep.mubr.f32.mxu0 0.0
    %601 = vmatmul.mubr.f32.gmra.mxu0 %v477
    %v602 = vpop.f32.mrf.mxu0
    %v603 = vadd.f32 %v509, %v602
    %v604 = vpop.f32.mrf.mxu0
    %605 = vmatprep.mubr.f32.mxu0 0.0
    %606 = vmatmul.mubr.f32.gmra.mxu0 %v478
    %v607 = vpop.f32.mrf.mxu0
    %v608 = vadd.f32 %v509, %v607
    %v609 = vpop.f32.mrf.mxu0
    %610 = vmatprep.mubr.f32.mxu0 0.0
    %611 = vmatmul.mubr.f32.gmra.mxu0 %v479
    %v612 = vpop.f32.mrf.mxu0
    %v613 = vadd.f32 %v509, %v612
    %v614 = vpop.f32.mrf.mxu0
    %615 = vmatprep.mubr.f32.mxu0 0.0
    %616 = vmatmul.mubr.f32.gmra.mxu0 %v480
    %v617 = vpop.f32.mrf.mxu0
    %v618 = vadd.f32 %v509, %v617
    %v619 = vpop.f32.mrf.mxu0
    %620 = vmatprep.mubr.f32.mxu0 0.0
    %621 = vmatmul.mubr.f32.gmra.mxu0 %v481
    %v622 = vpop.f32.mrf.mxu0
    %v623 = vadd.f32 %v509, %v622
    %v624 = vpop.f32.mrf.mxu0
    %625 = vmatprep.mubr.f32.mxu0 0.0
    %626 = vmatmul.mubr.f32.gmra.mxu0 %v482
    %v627 = vpop.f32.mrf.mxu0
    %v628 = vadd.f32 %v509, %v627
    %v629 = vpop.f32.mrf.mxu0
    %630 = vmatprep.mubr.f32.mxu0 0.0
    %631 = vmatmul.mubr.f32.gmra.mxu0 %v483
    %v632 = vpop.f32.mrf.mxu0
    %v633 = vadd.f32 %v509, %v632
    %v634 = vpop.f32.mrf.mxu0
    %635 = vmatprep.mubr.f32.mxu0 0.0
    %636 = vmatmul.mubr.f32.gmra.mxu0 %v484
    %v637 = vpop.f32.mrf.mxu0
    %v638 = vadd.f32 %v509, %v637
    %v639 = vpop.f32.mrf.mxu0
    %640 = vmatprep.mubr.f32.mxu0 0.0
    %641 = vmatmul.mubr.f32.gmra.mxu0 %v485
    %v642 = vpop.f32.mrf.mxu0
    %v643 = vadd.f32 %v509, %v642
    %v644 = vpop.f32.mrf.mxu0
    %645 = vmatprep.mubr.f32.mxu0 0.0
    %646 = vmatmul.mubr.f32.gmra.mxu0 %v486
    %v647 = vpop.f32.mrf.mxu0
    %v648 = vadd.f32 %v509, %v647
    %v649 = vpop.f32.mrf.mxu0
    %650 = vmatprep.mubr.f32.mxu0 0.0
    %651 = vmatmul.mubr.f32.gmra.mxu0 %v487
    %v652 = vpop.f32.mrf.mxu0
    %v653 = vadd.f32 %v509, %v652
    %v654 = vpop.f32.mrf.mxu0
    %655 = vdwg.mxu0
    %v656 = vmax.f32 %v578, 0.0
    %v657 = vmax.f32 %v583, 0.0
    %v658 = vmax.f32 %v588, 0.0
    %v659 = vmax.f32 %v593, 0.0
    %v660 = vmax.f32 %v598, 0.0
    %v661 = vmax.f32 %v603, 0.0
    %v662 = vmax.f32 %v608, 0.0
    %v663 = vmax.f32 %v613, 0.0
    %v664 = vmax.f32 %v618, 0.0
    %v665 = vmax.f32 %v623, 0.0
    %v666 = vmax.f32 %v628, 0.0
    %v667 = vmax.f32 %v633, 0.0
    %v668 = vmax.f32 %v638, 0.0
    %v669 = vmax.f32 %v643, 0.0
    %v670 = vmax.f32 %v648, 0.0
    %v671 = vmax.f32 %v653, 0.0
    %v672 = vld [vmem:[#allocation10] sm:$0xff]
    %v673 = vld [vmem:[#allocation10 + $0x8] sm:$0xff]
    %v674 = vld [vmem:[#allocation10 + $0x10] sm:$0xff]
    %v675 = vld [vmem:[#allocation10 + $0x18] sm:$0xff]
    %v676 = vld [vmem:[#allocation10 + $0x20] sm:$0xff]
    %v677 = vld [vmem:[#allocation10 + $0x28] sm:$0xff]
    %v678 = vld [vmem:[#allocation10 + $0x30] sm:$0xff]
    %v679 = vld [vmem:[#allocation10 + $0x38] sm:$0xff]
    %v680 = vld [vmem:[#allocation10 + $0x40] sm:$0xff]
    %v681 = vld [vmem:[#allocation10 + $0x48] sm:$0xff]
    %v682 = vld [vmem:[#allocation10 + $0x50] sm:$0xff]
    %v683 = vld [vmem:[#allocation10 + $0x58] sm:$0xff]
    %v684 = vld [vmem:[#allocation10 + $0x60] sm:$0xff]
    %v685 = vld [vmem:[#allocation10 + $0x68] sm:$0xff]
    %v686 = vld [vmem:[#allocation10 + $0x70] sm:$0xff]
    %v687 = vld [vmem:[#allocation10 + $0x78] sm:$0xff]
    %v688 = vld [vmem:[%s8] sm:$0x1]
    %v690 = vlaneseq
    %v691 = vshrl.u32 %v690, 7
    %v692 = vsub.s32 0, %v691
    %v693 = vrot.slane %v688, %v692
    %695 = vmatprep.subr.mxu0 0.0
    %696 = vmatpush1.msra.mxu0 %v687
    %697 = vmatprep.subr.mxu0 0.0
    %698 = vmatpush1.msra.mxu0 %v686
    %699 = vmatprep.subr.mxu0 0.0
    %700 = vmatpush1.msra.mxu0 %v685
    %701 = vmatprep.subr.mxu0 0.0
    %702 = vmatpush1.msra.mxu0 %v684
    %703 = vmatprep.subr.mxu0 0.0
    %704 = vmatpush1.msra.mxu0 %v683
    %705 = vmatprep.subr.mxu0 0.0
    %706 = vmatpush1.msra.mxu0 %v682
    %707 = vmatprep.subr.mxu0 0.0
    %708 = vmatpush1.msra.mxu0 %v681
    %709 = vmatprep.subr.mxu0 0.0
    %710 = vmatpush1.msra.mxu0 %v680
    %711 = vmatprep.subr.mxu0 0.0
    %712 = vmatpush1.msra.mxu0 %v679
    %713 = vmatprep.subr.mxu0 0.0
    %714 = vmatpush1.msra.mxu0 %v678
    %715 = vmatprep.subr.mxu0 0.0
    %716 = vmatpush1.msra.mxu0 %v677
    %717 = vmatprep.subr.mxu0 0.0
    %718 = vmatpush1.msra.mxu0 %v676
    %719 = vmatprep.subr.mxu0 0.0
    %720 = vmatpush1.msra.mxu0 %v675
    %721 = vmatprep.subr.mxu0 0.0
    %722 = vmatpush1.msra.mxu0 %v674
    %723 = vmatprep.subr.mxu0 0.0
    %724 = vmatpush1.msra.mxu0 %v673
    %725 = vmatprep.subr.mxu0 0.0
    %726 = vmatpush1.msra.mxu0 %v672
    %727 = vmatprep.subr.mxu0 0.0
    %728 = vmatpush2.msra.mxu0 0.0
    %729 = vmatprep.subr.mxu0 0.0
    %730 = vmatpush2.msra.mxu0 0.0
    %731 = vmatprep.subr.mxu0 0.0
    %732 = vmatpush2.msra.mxu0 0.0
    %733 = vmatprep.subr.mxu0 0.0
    %734 = vmatpush2.msra.mxu0 0.0
    %735 = vmatprep.subr.mxu0 0.0
    %736 = vmatpush2.msra.mxu0 0.0
    %737 = vmatprep.subr.mxu0 0.0
    %738 = vmatpush2.msra.mxu0 0.0
    %739 = vmatprep.subr.mxu0 0.0
    %740 = vmatpush2.msra.mxu0 0.0
    %741 = vmatprep.subr.mxu0 0.0
    %742 = vmatpush2.msra.mxu0 0.0
    %743 = vmatprep.subr.mxu0 0.0
    %744 = vmatpush2.msra.mxu0 0.0
    %745 = vmatprep.subr.mxu0 0.0
    %746 = vmatpush2.msra.mxu0 0.0
    %747 = vmatprep.subr.mxu0 0.0
    %748 = vmatpush2.msra.mxu0 0.0
    %749 = vmatprep.subr.mxu0 0.0
    %750 = vmatpush2.msra.mxu0 0.0
    %751 = vmatprep.subr.mxu0 0.0
    %752 = vmatpush2.msra.mxu0 0.0
    %753 = vmatprep.subr.mxu0 0.0
    %754 = vmatpush2.msra.mxu0 0.0
    %755 = vmatprep.subr.mxu0 0.0
    %756 = vmatpush2.msra.mxu0 0.0
    %757 = vmatprep.subr.mxu0 0.0
    %758 = vmatpush2.msra.mxu0 0.0
    %759 = vmatprep.mubr.f32.mxu0 0.0
    %760 = vmatmul.mubr.f32.gmra.mxu0 %v656
    %v761 = vpop.f32.mrf.mxu0
    %v762 = vadd.f32 %v693, %v761
    %v763 = vpop.f32.mrf.mxu0
    %764 = vmatprep.mubr.f32.mxu0 0.0
    %765 = vmatmul.mubr.f32.gmra.mxu0 %v657
    %v766 = vpop.f32.mrf.mxu0
    %v767 = vadd.f32 %v693, %v766
    %v768 = vpop.f32.mrf.mxu0
    %769 = vmatprep.mubr.f32.mxu0 0.0
    %770 = vmatmul.mubr.f32.gmra.mxu0 %v658
    %v771 = vpop.f32.mrf.mxu0
    %v772 = vadd.f32 %v693, %v771
    %v773 = vpop.f32.mrf.mxu0
    %774 = vmatprep.mubr.f32.mxu0 0.0
    %775 = vmatmul.mubr.f32.gmra.mxu0 %v659
    %v776 = vpop.f32.mrf.mxu0
    %v777 = vadd.f32 %v693, %v776
    %v778 = vpop.f32.mrf.mxu0
    %779 = vmatprep.mubr.f32.mxu0 0.0
    %780 = vmatmul.mubr.f32.gmra.mxu0 %v660
    %v781 = vpop.f32.mrf.mxu0
    %v782 = vadd.f32 %v693, %v781
    %v783 = vpop.f32.mrf.mxu0
    %784 = vmatprep.mubr.f32.mxu0 0.0
    %785 = vmatmul.mubr.f32.gmra.mxu0 %v661
    %v786 = vpop.f32.mrf.mxu0
    %v787 = vadd.f32 %v693, %v786
    %v788 = vpop.f32.mrf.mxu0
    %789 = vmatprep.mubr.f32.mxu0 0.0
    %790 = vmatmul.mubr.f32.gmra.mxu0 %v662
    %v791 = vpop.f32.mrf.mxu0
    %v792 = vadd.f32 %v693, %v791
    %v793 = vpop.f32.mrf.mxu0
    %794 = vmatprep.mubr.f32.mxu0 0.0
    %795 = vmatmul.mubr.f32.gmra.mxu0 %v663
    %v796 = vpop.f32.mrf.mxu0
    %v797 = vadd.f32 %v693, %v796
    %v798 = vpop.f32.mrf.mxu0
    %799 = vmatprep.mubr.f32.mxu0 0.0
    %800 = vmatmul.mubr.f32.gmra.mxu0 %v664
    %v801 = vpop.f32.mrf.mxu0
    %v802 = vadd.f32 %v693, %v801
    %v803 = vpop.f32.mrf.mxu0
    %804 = vmatprep.mubr.f32.mxu0 0.0
    %805 = vmatmul.mubr.f32.gmra.mxu0 %v665
    %v806 = vpop.f32.mrf.mxu0
    %v807 = vadd.f32 %v693, %v806
    %v808 = vpop.f32.mrf.mxu0
    %809 = vmatprep.mubr.f32.mxu0 0.0
    %810 = vmatmul.mubr.f32.gmra.mxu0 %v666
    %v811 = vpop.f32.mrf.mxu0
    %v812 = vadd.f32 %v693, %v811
    %v813 = vpop.f32.mrf.mxu0
    %814 = vmatprep.mubr.f32.mxu0 0.0
    %815 = vmatmul.mubr.f32.gmra.mxu0 %v667
    %v816 = vpop.f32.mrf.mxu0
    %v817 = vadd.f32 %v693, %v816
    %v818 = vpop.f32.mrf.mxu0
    %819 = vmatprep.mubr.f32.mxu0 0.0
    %820 = vmatmul.mubr.f32.gmra.mxu0 %v668
    %v821 = vpop.f32.mrf.mxu0
    %v822 = vadd.f32 %v693, %v821
    %v823 = vpop.f32.mrf.mxu0
    %824 = vmatprep.mubr.f32.mxu0 0.0
    %825 = vmatmul.mubr.f32.gmra.mxu0 %v669
    %v826 = vpop.f32.mrf.mxu0
    %v827 = vadd.f32 %v693, %v826
    %v828 = vpop.f32.mrf.mxu0
    %829 = vmatprep.mubr.f32.mxu0 0.0
    %830 = vmatmul.mubr.f32.gmra.mxu0 %v670
    %v831 = vpop.f32.mrf.mxu0
    %v832 = vadd.f32 %v693, %v831
    %v833 = vpop.f32.mrf.mxu0
    %834 = vmatprep.mubr.f32.mxu0 0.0
    %835 = vmatmul.mubr.f32.gmra.mxu0 %v671
    %v836 = vpop.f32.mrf.mxu0
    %v837 = vadd.f32 %v693, %v836
    %v838 = vpop.f32.mrf.mxu0
    %839 = vdwg.mxu0
    %v840 = vmax.f32 %v762, 0.0
    %v841 = vmax.f32 %v767, 0.0
    %v842 = vmax.f32 %v772, 0.0
    %v843 = vmax.f32 %v777, 0.0
    %v844 = vmax.f32 %v782, 0.0
    %v845 = vmax.f32 %v787, 0.0
    %v846 = vmax.f32 %v792, 0.0
    %v847 = vmax.f32 %v797, 0.0
    %v848 = vmax.f32 %v802, 0.0
    %v849 = vmax.f32 %v807, 0.0
    %v850 = vmax.f32 %v812, 0.0
    %v851 = vmax.f32 %v817, 0.0
    %v852 = vmax.f32 %v822, 0.0
    %v853 = vmax.f32 %v827, 0.0
    %v854 = vmax.f32 %v832, 0.0
    %v855 = vmax.f32 %v837, 0.0
    %856 = vst [vmem:[#allocation11] sm:$0xff] %v840
    %857 = vst [vmem:[#allocation11 + $0x8] sm:$0xff] %v841
    %858 = vst [vmem:[#allocation11 + $0x10] sm:$0xff] %v842
    %859 = vst [vmem:[#allocation11 + $0x18] sm:$0xff] %v843
    %860 = vst [vmem:[#allocation11 + $0x20] sm:$0xff] %v844
    %861 = vst [vmem:[#allocation11 + $0x28] sm:$0xff] %v845
    %862 = vst [vmem:[#allocation11 + $0x30] sm:$0xff] %v846
    %863 = vst [vmem:[#allocation11 + $0x38] sm:$0xff] %v847
    %864 = vst [vmem:[#allocation11 + $0x40] sm:$0xff] %v848
    %865 = vst [vmem:[#allocation11 + $0x48] sm:$0xff] %v849
    %866 = vst [vmem:[#allocation11 + $0x50] sm:$0xff] %v850
    %867 = vst [vmem:[#allocation11 + $0x58] sm:$0xff] %v851
    %868 = vst [vmem:[#allocation11 + $0x60] sm:$0xff] %v852
    %869 = vst [vmem:[#allocation11 + $0x68] sm:$0xff] %v853
    %870 = vst [vmem:[#allocation11 + $0x70] sm:$0xff] %v854
    %871 = vst [vmem:[#allocation11 + $0x78] sm:$0xff] %v855
    %872 = vst [vmem:[#allocation12] sm:$0xff] %v472
    %873 = vst [vmem:[#allocation12 + $0x8] sm:$0xff] %v473
    %874 = vst [vmem:[#allocation12 + $0x10] sm:$0xff] %v474
    %875 = vst [vmem:[#allocation12 + $0x18] sm:$0xff] %v475
    %876 = vst [vmem:[#allocation12 + $0x20] sm:$0xff] %v476
    %877 = vst [vmem:[#allocation12 + $0x28] sm:$0xff] %v477
    %878 = vst [vmem:[#allocation12 + $0x30] sm:$0xff] %v478
    %879 = vst [vmem:[#allocation12 + $0x38] sm:$0xff] %v479
    %880 = vst [vmem:[#allocation12 + $0x40] sm:$0xff] %v480
    %881 = vst [vmem:[#allocation12 + $0x48] sm:$0xff] %v481
    %882 = vst [vmem:[#allocation12 + $0x50] sm:$0xff] %v482
    %883 = vst [vmem:[#allocation12 + $0x58] sm:$0xff] %v483
    %884 = vst [vmem:[#allocation12 + $0x60] sm:$0xff] %v484
    %885 = vst [vmem:[#allocation12 + $0x68] sm:$0xff] %v485
    %886 = vst [vmem:[#allocation12 + $0x70] sm:$0xff] %v486
    %887 = vst [vmem:[#allocation12 + $0x78] sm:$0xff] %v487
    // Predicated region
    $region58: #{tpu_custom_call.1} parent=1 // pred_check
      _
    $region59: #{tpu_custom_call.1} parent=1 // pred_check_branch
      %889 = sbr.rel (0) target = $region61
    $region60: #{tpu_custom_call.1} parent=1 // pred_region
      %s891 = ssub.s32 2048, 2048
      %892 = vsyncadd [#allocation4], %s891
      %s893 = sshll.u32 [#allocation11], 4
      %s894 = int_to_ptr.vmem [resolvable:$true] %s893
      %899 = dma.vmem_to_hbm [thread:$0]  %s894, 2048, %s9, [#allocation4], 128, 128, 8
    $region61: #{tpu_custom_call.1} parent=1 // pred_fallthru
      _
    // Predicated region
    $region62: #{tpu_custom_call.1} parent=1 // pred_check
      _
    $region63: #{tpu_custom_call.1} parent=1 // pred_check_branch
      %901 = sbr.rel (0) target = $region65
    $region64: #{tpu_custom_call.1} parent=1 // pred_region
      %s903 = ssub.s32 2048, 2048
      %904 = vsyncadd [#allocation13], %s903
      %s905 = sshll.u32 [#allocation12], 4
      %s906 = int_to_ptr.vmem [resolvable:$true] %s905
      %911 = dma.vmem_to_hbm [thread:$0]  %s906, 2048, %s10, [#allocation13], 128, 128, 8
    $region65: #{tpu_custom_call.1} parent=1 // pred_fallthru
      _
    // Predicated region
    $region66: #{tpu_custom_call.1} parent=1 // pred_check
      _
    $region67: #{tpu_custom_call.1} parent=1 // pred_check_branch
      %913 = sbr.rel (0) target = $region69
    $region68: #{tpu_custom_call.1} parent=1 // pred_region
      %914 = dma.done [#allocation4], 2048
    $region69: #{tpu_custom_call.1} parent=1 // pred_fallthru
      _
    // Predicated region
    $region70: #{tpu_custom_call.1} parent=1 // pred_check
      _
    $region71: #{tpu_custom_call.1} parent=1 // pred_check_branch
      %916 = sbr.rel (0) target = $region73
    $region72: #{tpu_custom_call.1} parent=1 // pred_region
      %917 = dma.done [#allocation13], 2048
    $region73: #{tpu_custom_call.1} parent=1 // pred_fallthru
      _
    %918 = vsyncpa [#allocation3], 1
    %919 = vsyncpa [#allocation6], 1
    %920 = vsyncpa [#allocation9], 1
    %921 = vsyncpa [#allocation4], 1
    %922 = vsyncpa [#allocation13], 1

</llo_original>
